<compile_context>
chip_gen: v7x
topology: tpu7x:2x2x1
jax: 0.10.0
libtpu: 0.0.40
codegen_flags: <defaults>
</compile_context>

<pallas_src>
import jax
import jax.numpy as jnp
from jax.experimental import pallas as pl
from jax.experimental.pallas import tpu as pltpu

_CHUNK = 128  # cumsum-chunk width: native MXU size on v5e, minimal mask/flops on v6e/v7x.


def _round_up(n, m):
    return ((n + m - 1) // m) * m


def _pick_tile(n, cap):
    """Largest multiple of 128 that divides n and is <= cap (n is pre-padded to 128)."""
    t = min(cap, n)
    t -= t % 128
    while t >= 128:
        if n % t == 0:
            return t
        t -= 128
    return n


def _errors_kernel(p_ref, lab_ref, fg_ref, err_ref):
    """One-hot foreground mask (bf16, exact 0/1) + absolute errors |fg - p| (f32)."""
    C, T = err_ref.shape
    p = p_ref[0]                                                 # (C, T) f32
    labels = lab_ref[0]                                          # (1, T) i32
    class_ids = jax.lax.broadcasted_iota(jnp.int32, (C, T), 0)
    fg = (labels == class_ids).astype(jnp.float32)               # (C, T)
    fg_ref[...] = fg.astype(jnp.bfloat16)                        # exact 0/1; halves HBM traffic
    err_ref[...] = jnp.abs(fg - p)


def _lovasz_kernel(gts_ref, err_ref, fg_ref, out_ref, mask_ref, iota_ref, cs_ref, loss_ref):
    """Chunked Lovasz gradient + dot with sorted errors, carried across P tiles."""
    C, T = err_ref.shape
    CH = mask_ref.shape[0]
    n_chunks = T // CH
    t = pl.program_id(0)

    @pl.when(t == 0)
    def _init():
        # 128-wide triangular cumsum mask, mask[j, i] = 1 if j <= i (built once; bf16 exact).
        row = jax.lax.broadcasted_iota(jnp.int32, (CH, CH), 0)
        col = jax.lax.broadcasted_iota(jnp.int32, (CH, CH), 1)
        mask_ref[...] = (row <= col).astype(jnp.float32).astype(jnp.bfloat16)
        # Hoisted 1-indexed position iota for one chunk.
        iota_ref[...] = (
            jax.lax.broadcasted_iota(jnp.int32, (1, CH), 1) + 1).astype(jnp.float32)
        cs_ref[...] = jnp.zeros_like(cs_ref)
        loss_ref[...] = jnp.zeros_like(loss_ref)

    gts = gts_ref[...]                                           # (C, 1) f32 (resident block)
    mask = mask_ref[...]                                         # (CH, CH) bf16, ~8 vregs
    iota = iota_ref[...]                                         # (1, CH) f32
    base_t = (t * T).astype(jnp.float32)

    def chunk_body(j, carry):
        run_cs, loss_part = carry                                # both (C, 1) f32
        start = pl.multiple_of(j * CH, CH)
        fg_c = fg_ref[:, pl.ds(start, CH)]                       # (C, CH) bf16 (0/1)
        err_c = err_ref[:, pl.ds(start, CH)]                     # (C, CH) f32

        # Inclusive within-chunk cumsum (bf16 MXU matmul, exact for 0/1) + running carry.
        cs = jnp.dot(fg_c, mask, preferred_element_type=jnp.float32) + run_cs

        # Global 1-indexed position of each sorted element.
        pos = base_t + (j * CH).astype(jnp.float32) + iota       # (1, CH)

        union = gts + pos - cs                                   # == gts + cumsum(1 - fg)
        diff = gts - cs                                          # intersection
        is_fg = fg_c > 0
        # Closed-form jaccard[i] - jaccard[i-1] with a single divide per element:
        #   fg==1 : 1 / union
        #   fg==0 : (gts - cs) / (union * (union - 1))   (max(.,1) keeps absent classes finite)
        num = jnp.where(is_fg, 1.0, diff)
        den = union * jnp.where(is_fg, 1.0, jnp.maximum(union - 1.0, 1.0))
        grad = num / den

        loss_part = loss_part + jnp.sum(err_c * grad, axis=1, keepdims=True)
        return cs[:, CH - 1:CH], loss_part

    run_cs, loss_part = jax.lax.fori_loop(
        0, n_chunks, chunk_body,
        (cs_ref[...], jnp.zeros((C, 1), dtype=jnp.float32)),
        unroll=True)

    cs_ref[...] = run_cs                                         # carry cumulative sum forward
    loss_ref[...] += loss_part                                   # (C, 1) per-class partial dot

    @pl.when(t == pl.num_programs(0) - 1)
    def _finalize():
        # classes='present': average only over classes that appear in the labels.
        present = (gts > 0.0).astype(jnp.float32)                # (C, 1)
        n_present = jnp.sum(present)
        tot = jnp.sum(loss_ref[...] * present)
        out_ref[0, 0] = jnp.where(n_present > 0.0, tot / n_present, 0.0)


def lovasz_softmax_pallas(probas, labels, *, err_tile_cap=4096, lov_tile_cap=2048):
    """Forward of Lovasz_softmax(classes='present', per_image=False, ignore=None).

    probas: [B, C, H, W] float class probabilities.  labels: [B, H, W] int.
    """
    B, C, H, W = probas.shape
    HW = H * W

    # NCHW -> (B, C, HW) / (B, 1, HW): free reshapes; class-major (C, P) layout is produced
    # by the errors-kernel output index_map.
    probas_r = probas.reshape(B, C, HW).astype(jnp.float32)
    labels_r = labels.reshape(B, 1, HW).astype(jnp.int32)

    # Pad the per-image pixel axis to a multiple of 128.  Loss-neutral: p=0 and label=-1
    # give fg=0 and err=0 for every class, and gts is unchanged.
    HW_pad = _round_up(HW, 128)
    if HW_pad != HW:
        probas_r = jnp.pad(probas_r, ((0, 0), (0, 0), (0, HW_pad - HW)))
        labels_r = jnp.pad(labels_r, ((0, 0), (0, 0), (0, HW_pad - HW)), constant_values=-1)
    P0 = B * HW_pad

    T_e = _pick_tile(HW_pad, err_tile_cap)
    n_te = HW_pad // T_e

    fg, errors = pl.pallas_call(
        _errors_kernel,
        out_shape=(jax.ShapeDtypeStruct((C, P0), jnp.bfloat16),
                   jax.ShapeDtypeStruct((C, P0), jnp.float32)),
        grid=(B, n_te),
        in_specs=[pl.BlockSpec((1, C, T_e), lambda b, t: (b, 0, t)),
                  pl.BlockSpec((1, 1, T_e), lambda b, t: (b, 0, t))],
        out_specs=(pl.BlockSpec((C, T_e), lambda b, t: (0, b * n_te + t)),
                   pl.BlockSpec((C, T_e), lambda b, t: (0, b * n_te + t))),
        compiler_params=pltpu.CompilerParams(
            dimension_semantics=("parallel", "parallel")),
    )(probas_r, labels_r)

    # Per-class pixel counts directly from the labels (tiny fused XLA compare+reduce);
    # avoids re-reading the whole (C, P) fg array.  Padded labels (-1) never match.
    class_ids = jnp.arange(C, dtype=jnp.int32).reshape(C, 1)
    gts = jnp.sum((labels_r.reshape(1, P0) == class_ids).astype(jnp.float32),
                  axis=1, keepdims=True)                          # (C, 1)

    # Per-class descending key/value sort stays in XLA (no Pallas lowering for sort).
    neg_err_sorted, fg_sorted = jax.lax.sort_key_val(-errors, fg, dimension=1)
    errors_sorted = -neg_err_sorted

    # Pick a large tile (multiple of the cumsum chunk) and pad the sorted arrays up to a
    # multiple of it.  Appended err=0 / fg=0 columns keep the descending order, contribute
    # zero to the loss, and leave gts untouched.
    cap = max(_CHUNK, lov_tile_cap - lov_tile_cap % _CHUNK)
    T_l = max(_CHUNK, min(cap, P0))
    P_pad = _round_up(P0, T_l)
    if P_pad != P0:
        errors_sorted = jnp.pad(errors_sorted, ((0, 0), (0, P_pad - P0)))
        fg_sorted = jnp.pad(fg_sorted, ((0, 0), (0, P_pad - P0)))
    n_tl = P_pad // T_l

    loss = pl.pallas_call(
        _lovasz_kernel,
        out_shape=jax.ShapeDtypeStruct((1, 1), jnp.float32),
        grid=(n_tl,),
        in_specs=[pl.BlockSpec((C, 1), lambda t: (0, 0)),        # gts, resident across grid
                  pl.BlockSpec((C, T_l), lambda t: (0, t)),      # errors_sorted tile
                  pl.BlockSpec((C, T_l), lambda t: (0, t))],     # fg_sorted tile
        out_specs=pl.BlockSpec(memory_space=pltpu.MemorySpace.SMEM),
        scratch_shapes=[pltpu.VMEM((_CHUNK, _CHUNK), jnp.bfloat16),  # triangular cumsum mask
                        pltpu.VMEM((1, _CHUNK), jnp.float32),        # hoisted position iota
                        pltpu.VMEM((C, 1), jnp.float32),             # running cumsum carry
                        pltpu.VMEM((C, 1), jnp.float32)],            # per-class loss acc
        compiler_params=pltpu.CompilerParams(
            dimension_semantics=("arbitrary",)),
    )(gts, errors_sorted, fg_sorted)
    return loss[0, 0]


def _lovasz_softmax_ref(probas, labels):
    """Pure-JAX reference mirroring the PyTorch code (for a sanity check)."""
    B, C, H, W = probas.shape
    pf = jnp.transpose(probas, (0, 2, 3, 1)).reshape(-1, C)
    lf = labels.reshape(-1)
    losses, present = [], []
    for c in range(C):
        fg = (lf == c).astype(jnp.float32)
        errors = jnp.abs(fg - pf[:, c])
        order = jnp.argsort(-errors)
        es, fs = errors[order], fg[order]
        gts = fs.sum()
        inter = gts - jnp.cumsum(fs)
        union = gts + jnp.cumsum(1.0 - fs)
        jac = 1.0 - inter / union
        jac = jnp.concatenate([jac[:1], jac[1:] - jac[:-1]])
        losses.append(jnp.dot(es, jac))
        present.append((gts > 0).astype(jnp.float32))
    losses = jnp.stack(losses)
    present = jnp.stack(present)
    n = present.sum()
    return jnp.where(n > 0, (losses * present).sum() / n, 0.0)


if __name__ == "__main__":
    key = jax.random.PRNGKey(0)
    k1, k2 = jax.random.split(key)
    B, C, H, W = 2, 4, 16, 16
    logits = jax.random.normal(k1, (B, C, H, W), dtype=jnp.float32)
    probas = jax.nn.softmax(logits, axis=1)                 # class probabilities, NCHW
    labels = jax.random.randint(k2, (B, H, W), 0, C, dtype=jnp.int32)

    loss = jax.block_until_ready(lovasz_softmax_pallas(probas, labels))
    ref = jax.block_until_ready(_lovasz_softmax_ref(probas, labels))
    assert jnp.allclose(loss, ref, rtol=1e-4, atol=1e-4), (float(loss), float(ref))
    print("KERNEL_OK")
</pallas_src>

<mosaic_0001>
module attributes {stable_mosaic.version = 11 : i64} {
  func.func @_errors_kernel(%arg0: i32, %arg1: i32, %arg2: memref<1x4x256xf32, #tpu.memory_space<vmem>>, %arg3: memref<1x1x256xi32, #tpu.memory_space<vmem>>, %arg4: memref<4x256xbf16, #tpu.memory_space<vmem>>, %arg5: memref<4x256xf32, #tpu.memory_space<vmem>>) attributes {dimension_semantics = [#tpu.dimension_semantics<parallel>, #tpu.dimension_semantics<parallel>], iteration_bounds = array<i64: 2, 1>, scalar_prefetch = 0 : i64, scratch_operands = 0 : i64, tpu.core_type = #tpu.core_type<tc>, window_params = [{transform_indices = @transform_0, window_bounds = array<i64: 1, 4, 256>}, {transform_indices = @transform_1, window_bounds = array<i64: 1, 1, 256>}, {transform_indices = @transform_2, window_bounds = array<i64: 4, 256>}, {transform_indices = @transform_3, window_bounds = array<i64: 4, 256>}]} {
    %c0 = arith.constant 0 : index
    %c0_0 = arith.constant 0 : index
    %c0_1 = arith.constant 0 : index
    %0 = vector.load %arg2[%c0, %c0_0, %c0_1] : memref<1x4x256xf32, #tpu.memory_space<vmem>>, vector<1x4x256xf32>
    %1 = vector.shape_cast %0 : vector<1x4x256xf32> to vector<4x256xf32>
    %c0_2 = arith.constant 0 : index
    %c0_3 = arith.constant 0 : index
    %c0_4 = arith.constant 0 : index
    %2 = vector.load %arg3[%c0_2, %c0_3, %c0_4] : memref<1x1x256xi32, #tpu.memory_space<vmem>>, vector<1x1x256xi32>
    %3 = vector.shape_cast %2 : vector<1x1x256xi32> to vector<1x256xi32>
    %4 = tpu.iota {dimensions = array<i32: 0>} : vector<4x256xi32>
    %5 = vector.broadcast %3 : vector<1x256xi32> to vector<4x256xi32>
    %6 = arith.cmpi eq, %5, %4 : vector<4x256xi32>
    %7 = arith.extui %6 : vector<4x256xi1> to vector<4x256xi32>
    %8 = arith.sitofp %7 : vector<4x256xi32> to vector<4x256xf32>
    %9 = arith.truncf %8 : vector<4x256xf32> to vector<4x256xbf16>
    %c0_5 = arith.constant 0 : index
    %c0_6 = arith.constant 0 : index
    %10 = vector.load %arg4[%c0_5, %c0_6] : memref<4x256xbf16, #tpu.memory_space<vmem>>, vector<4x256xbf16>
    tpu.vector_store %arg4[%c0_5, %c0_6], %9 {strides = array<i32>} : memref<4x256xbf16, #tpu.memory_space<vmem>>, vector<4x256xbf16>,
    %11 = arith.subf %8, %1 : vector<4x256xf32>
    %12 = math.absf %11 : vector<4x256xf32>
    %c0_7 = arith.constant 0 : index
    %c0_8 = arith.constant 0 : index
    %13 = vector.load %arg5[%c0_7, %c0_8] : memref<4x256xf32, #tpu.memory_space<vmem>>, vector<4x256xf32>
    tpu.vector_store %arg5[%c0_7, %c0_8], %12 {strides = array<i32>} : memref<4x256xf32, #tpu.memory_space<vmem>>, vector<4x256xf32>,
    return
  }
  func.func @transform_0(%arg0: i32, %arg1: i32) -> (i32, i32, i32) {
    %c0_i32 = arith.constant 0 : i32
    %c0_i32_0 = arith.constant 0 : i32
    return %arg0, %c0_i32, %arg1 : i32, i32, i32
  }
  func.func @transform_1(%arg0: i32, %arg1: i32) -> (i32, i32, i32) {
    %c0_i32 = arith.constant 0 : i32
    %c0_i32_0 = arith.constant 0 : i32
    return %arg0, %c0_i32, %arg1 : i32, i32, i32
  }
  func.func @transform_2(%arg0: i32, %arg1: i32) -> (i32, i32) {
    %c1_i32 = arith.constant 1 : i32
    %0 = arith.muli %arg0, %c1_i32 : i32
    %1 = arith.addi %0, %arg1 : i32
    %c0_i32 = arith.constant 0 : i32
    %c0_i32_0 = arith.constant 0 : i32
    return %c0_i32, %1 : i32, i32
  }
  func.func @transform_3(%arg0: i32, %arg1: i32) -> (i32, i32) {
    %c1_i32 = arith.constant 1 : i32
    %0 = arith.muli %arg0, %c1_i32 : i32
    %1 = arith.addi %0, %arg1 : i32
    %c0_i32 = arith.constant 0 : i32
    %c0_i32_0 = arith.constant 0 : i32
    return %c0_i32, %1 : i32, i32
  }
}

</mosaic_0001>

<llo_original>
// kernel: tpu_custom_call.1
$region0: #{tpu_custom_call.1}
  #allocation0 [shape = 'u32[]', space=smem, size = 0x4, offset = 0x4, fixed_abs, tag = 'smem constant byte address 0x4 - core index']
  #allocation1 [shape = 'u32[144,128]{1,0:T(1,128)}', space=vmem, size = 0x12000, scoped, tag = 'internal scratch']
  %s0 = inlined_call_operand.hbm [shape: f32[2,4,256], index: 0, kind: input, shape index: {}]
  %s1 = inlined_call_operand.hbm [shape: s32[2,1,256], index: 1, kind: input, shape index: {}]
  %s2 = inlined_call_operand.hbm [shape: bf16[4,512], index: 2, kind: output, shape index: {0}]
  %s3 = inlined_call_operand.hbm [shape: f32[4,512], index: 3, kind: output, shape index: {1}]
  %4 = xla_tuple %s2, %s3
  %s5 = sld [smem:[#allocation0]]
  $region57: #{tpu_custom_call.1} parent=0
    _
  %s7 = ssub.s32 1, %s5
  %s8 = scalar_select 0, %s7, %s5
  $region1: #{tpu_custom_call.1} parent=0
    #allocation2 [shape = 'u8[8192]{0}', space=vmem, size = 0x2000, scoped, tag = 'input window, operand 0']
    #allocation3 [shape = 's32[2]{0}', space=sflag, size = 0x8, scoped, tag = 'scoped memory for tpu_custom_call.1']
    #allocation4 [shape = 's32[2]{0}', space=sflag, size = 0x8, scoped, tag = 'scoped memory for tpu_custom_call.1']
    #allocation5 [shape = 'u8[2048]{0}', space=vmem, size = 0x800, scoped, tag = 'input window, operand 1']
    #allocation6 [shape = 's32[2]{0}', space=sflag, size = 0x8, scoped, tag = 'scoped memory for tpu_custom_call.1']
    #allocation7 [shape = 'u8[4096]{0}', space=vmem, size = 0x1000, scoped, tag = 'output window, operand 0']
    #allocation8 [shape = 'u8[8192]{0}', space=vmem, size = 0x2000, scoped, tag = 'output window, operand 1']
    #allocation9 [shape = 's32[2]{0}', space=sflag, size = 0x8, scoped, tag = 'scoped memory for tpu_custom_call.1']
    %9 = vsyncpa [#allocation3], 0
    %s10 = scalar_lea.sflag [#allocation3], 1
    %11 = vsyncpa %s10, 0
    %12 = vsyncpa [#allocation6], 0
    %s13 = scalar_lea.sflag [#allocation6], 1
    %14 = vsyncpa %s13, 0
    %15 = vsyncpa [#allocation4], 0
    %s16 = scalar_lea.sflag [#allocation4], 1
    %17 = vsyncpa %s16, 0
    %18 = vsyncpa [#allocation9], 0
    %s19 = scalar_lea.sflag [#allocation9], 1
    %20 = vsyncpa %s19, 0
    loop: start=0, step=1, limit=4
    $region2: #{tpu_custom_call.1} parent=1 // loop_pre_header
      _
    $region3: #{tpu_custom_call.1} parent=1 // loop_header
      %s22 = sphi 0, %s26
      %p23 = scmp.ge.s32.totalorder %s22, 4
      %s29 = sphi 0, %s41
      %s30 = sphi 0, %s37
      %s31 = sphi 0, %s29
      %s32 = sphi 0, %s30
      %s33 = sphi 0, %s31
      %s34 = sphi 0, %s32
      %s46 = sphi 0, %s48
      %s49 = sphi 0, %s46
      %s50 = sphi 0, %s49
      %s66 = sphi 0, %s50
      %s74 = sphi 0, %s76
      %s77 = sphi 0, %s74
      %s78 = sphi 0, %s77
      %s94 = sphi 0, %s78
      %s102 = sphi 0, %s104
      %s105 = sphi 0, %s102
      %s106 = sphi 0, %s105
      %s122 = sphi 0, %s106
      %s130 = sphi 0, %s132
      %s133 = sphi 0, %s130
      %s134 = sphi 0, %s133
      %s150 = sphi 0, %s134
    $region4: #{tpu_custom_call.1} parent=1 // loop_header_branch
      %25 = sbr.rel (%p23) target = $region8
    $region5: #{tpu_custom_call.1} parent=1 // loop_body
      %s27 = ssub.s32 %s22, 1
      %s28 = ssub.s32 %s22, 2
      %s35 = sadd.s32 1, %s30
      %p36 = scmp.ge.s32.totalorder %s35, 1
      %s37 = scalar_select %p36, 0, %s35
      %s38 = sadd.s32 1, %s29
      %s39 = scalar_select %p36, %s38, %s29
      %p40 = scmp.ge.s32.totalorder %s39, 2
      %s41 = scalar_select %p40, 0, %s39
      %s42 = ssub.s32 %s29, %s41
      %s43 = ssub.s32 %s30, %s37
      %s44 = sor.u32 %s42, %s43
      %p45 = scmp.eq.s32.totalorder %s44, 0
      %s47 = sadd.s32 %s46, 1
      %s48 = scalar_select %p45, %s46, %s47
      %p51 = pneg %p45
      %p52 = scmp.eq.s32.totalorder %s22, 1
      %p53 = por %p51, %p52
      %p54 = scmp.ne.s32.totalorder %s46, %s49
      %p55 = scmp.eq.s32.totalorder %s22, 0
      %p56 = por %p54, %p55
      %p57 = scmp.ne.s32.totalorder %s46, %s49
      %p58 = scmp.eq.s32.totalorder %s27, 1
      %p59 = por %p57, %p58
      %p60 = scmp.ne.s32.totalorder %s49, %s50
      %p61 = scmp.eq.s32.totalorder %s27, 0
      %p62 = por %p60, %p61
      %p63 = scmp.ne.s32.totalorder %s49, %s50
      %p64 = scmp.eq.s32.totalorder %s28, 1
      %p65 = por %p63, %p64
      %p67 = scmp.ne.s32.totalorder %s50, %s66
      %p68 = scmp.eq.s32.totalorder %s28, 0
      %p69 = por %p67, %p68
      %s70 = ssub.s32 %s29, %s41
      %s71 = ssub.s32 %s30, %s37
      %s72 = sor.u32 %s70, %s71
      %p73 = scmp.eq.s32.totalorder %s72, 0
      %s75 = sadd.s32 %s74, 1
      %s76 = scalar_select %p73, %s74, %s75
      %p79 = pneg %p73
      %p80 = scmp.eq.s32.totalorder %s22, 1
      %p81 = por %p79, %p80
      %p82 = scmp.ne.s32.totalorder %s74, %s77
      %p83 = scmp.eq.s32.totalorder %s22, 0
      %p84 = por %p82, %p83
      %p85 = scmp.ne.s32.totalorder %s74, %s77
      %p86 = scmp.eq.s32.totalorder %s27, 1
      %p87 = por %p85, %p86
      %p88 = scmp.ne.s32.totalorder %s77, %s78
      %p89 = scmp.eq.s32.totalorder %s27, 0
      %p90 = por %p88, %p89
      %p91 = scmp.ne.s32.totalorder %s77, %s78
      %p92 = scmp.eq.s32.totalorder %s28, 1
      %p93 = por %p91, %p92
      %p95 = scmp.ne.s32.totalorder %s78, %s94
      %p96 = scmp.eq.s32.totalorder %s28, 0
      %p97 = por %p95, %p96
      %s98 = sadd.s32 %s29, %s30
      %s99 = sadd.s32 %s41, %s37
      %s100 = ssub.s32 %s98, %s99
      %p101 = scmp.eq.s32.totalorder %s100, 0
      %s103 = sadd.s32 %s102, 1
      %s104 = scalar_select %p101, %s102, %s103
      %p107 = pneg %p101
      %p108 = scmp.eq.s32.totalorder %s22, 1
      %p109 = por %p107, %p108
      %p110 = scmp.ne.s32.totalorder %s102, %s105
      %p111 = scmp.eq.s32.totalorder %s22, 0
      %p112 = por %p110, %p111
      %p113 = scmp.ne.s32.totalorder %s102, %s105
      %p114 = scmp.eq.s32.totalorder %s27, 1
      %p115 = por %p113, %p114
      %p116 = scmp.ne.s32.totalorder %s105, %s106
      %p117 = scmp.eq.s32.totalorder %s27, 0
      %p118 = por %p116, %p117
      %p119 = scmp.ne.s32.totalorder %s105, %s106
      %p120 = scmp.eq.s32.totalorder %s28, 1
      %p121 = por %p119, %p120
      %p123 = scmp.ne.s32.totalorder %s106, %s122
      %p124 = scmp.eq.s32.totalorder %s28, 0
      %p125 = por %p123, %p124
      %s126 = sadd.s32 %s29, %s30
      %s127 = sadd.s32 %s41, %s37
      %s128 = ssub.s32 %s126, %s127
      %p129 = scmp.eq.s32.totalorder %s128, 0
      %s131 = sadd.s32 %s130, 1
      %s132 = scalar_select %p129, %s130, %s131
      %p135 = pneg %p129
      %p136 = scmp.eq.s32.totalorder %s22, 1
      %p137 = por %p135, %p136
      %p138 = scmp.ne.s32.totalorder %s130, %s133
      %p139 = scmp.eq.s32.totalorder %s22, 0
      %p140 = por %p138, %p139
      %p141 = scmp.ne.s32.totalorder %s130, %s133
      %p142 = scmp.eq.s32.totalorder %s27, 1
      %p143 = por %p141, %p142
      %p144 = scmp.ne.s32.totalorder %s133, %s134
      %p145 = scmp.eq.s32.totalorder %s27, 0
      %p146 = por %p144, %p145
      %p147 = scmp.ne.s32.totalorder %s133, %s134
      %p148 = scmp.eq.s32.totalorder %s28, 1
      %p149 = por %p147, %p148
      %p151 = scmp.ne.s32.totalorder %s134, %s150
      %p152 = scmp.eq.s32.totalorder %s28, 0
      %p153 = por %p151, %p152
      %p154 = scmp.le.s32.totalorder 1, %s22
      %p155 = scmp.lt.s32.totalorder %s22, 3
      %p156 = pnand %p154, %p155
      %p157 = pneg %p156
      // Predicated region
      $region9: #{tpu_custom_call.1} parent=5 // pred_check
        _
      $region10: #{tpu_custom_call.1} parent=5 // pred_check_branch
        %159 = sbr.rel (%p156) target = $region12
      $region11: #{tpu_custom_call.1} parent=5 // pred_region
        %s160 = ssub.s32 %s22, 1
      $region12: #{tpu_custom_call.1} parent=5 // pred_fallthru
        _
      %p161 = scmp.lt.s32.totalorder %s22, 2
      // Predicated region
      $region13: #{tpu_custom_call.1} parent=5 // pred_check
        %p162 = pneg %p161
      $region14: #{tpu_custom_call.1} parent=5 // pred_check_branch
        %164 = sbr.rel (%p162) target = $region16
      $region15: #{tpu_custom_call.1} parent=5 // pred_region
        // Predicated region
        $region17: #{tpu_custom_call.1} parent=15 // pred_check
          %p165 = pneg %p56
        $region18: #{tpu_custom_call.1} parent=15 // pred_check_branch
          %167 = sbr.rel (%p165) target = $region20
        $region19: #{tpu_custom_call.1} parent=15 // pred_region
          %s168 = sand.u32 %s46, 1
          %s169 = scalar_lea.sflag [#allocation3], %s168
          %s170 = sand.u32 %s46, 1
          %s171 = smul.addr %s170, 8
          %s172 = scalar_lea.vmem [#allocation2], %s171
          %s173 = smul.u32 2, %s30
          %s175 = ssub.s32 128, 128
          %176 = vsyncadd %s169, %s175
          %s177 = smul.addr %s29, 2
          %s178 = sadd.s32 %s173, %s177
          %s179 = smul.addr %s178, 64
          %s180 = scalar_lea.hbm %s0, %s179
          %s182 = sshll.u32 %s172, 4
          %s183 = int_to_ptr.vmem [resolvable:$true] %s182
          %185 = dma.hbm_to_vmem [thread:$0]  %s180, 128, %s183, %s169
        $region20: #{tpu_custom_call.1} parent=15 // pred_fallthru
          _
        // Predicated region
        $region21: #{tpu_custom_call.1} parent=15 // pred_check
          %p186 = pneg %p84
        $region22: #{tpu_custom_call.1} parent=15 // pred_check_branch
          %188 = sbr.rel (%p186) target = $region24
        $region23: #{tpu_custom_call.1} parent=15 // pred_region
          %s189 = sand.u32 %s74, 1
          %s190 = scalar_lea.sflag [#allocation6], %s189
          %s191 = sand.u32 %s74, 1
          %s192 = smul.addr %s191, 2
          %s193 = scalar_lea.vmem [#allocation5], %s192
          %s194 = smul.u32 2, %s30
          %s196 = ssub.s32 32, 32
          %197 = vsyncadd %s190, %s196
          %s198 = smul.addr %s29, 2
          %s199 = sadd.s32 %s194, %s198
          %s200 = smul.addr %s199, 16
          %s201 = scalar_lea.hbm %s1, %s200
          %s203 = sshll.u32 %s193, 4
          %s204 = int_to_ptr.vmem [resolvable:$true] %s203
          %206 = dma.hbm_to_vmem [thread:$0]  %s201, 32, %s204, %s190
        $region24: #{tpu_custom_call.1} parent=15 // pred_fallthru
          _
      $region16: #{tpu_custom_call.1} parent=5 // pred_fallthru
        _
      %p207 = scmp.le.s32.totalorder 1, %s22
      %p208 = scmp.lt.s32.totalorder %s22, 3
      %p209 = pnand %p207, %p208
      %p210 = pneg %p209
      // Predicated region
      $region25: #{tpu_custom_call.1} parent=5 // pred_check
        _
      $region26: #{tpu_custom_call.1} parent=5 // pred_check_branch
        %212 = sbr.rel (%p209) target = $region28
      $region27: #{tpu_custom_call.1} parent=5 // pred_region
        %s213 = ssub.s32 %s22, 1
        %s214 = sand.u32 %s49, 1
        %s215 = scalar_lea.sflag [#allocation3], %s214
        %s216 = sand.u32 %s49, 1
        %s217 = smul.addr %s216, 8
        %s218 = scalar_lea.vmem [#allocation2], %s217
        // Predicated region
        $region29: #{tpu_custom_call.1} parent=27 // pred_check
          %p219 = pneg %p62
        $region30: #{tpu_custom_call.1} parent=27 // pred_check_branch
          %221 = sbr.rel (%p219) target = $region32
        $region31: #{tpu_custom_call.1} parent=27 // pred_region
          %222 = dma.done %s215, 128
        $region32: #{tpu_custom_call.1} parent=27 // pred_fallthru
          _
        %s223 = sand.u32 %s77, 1
        %s224 = scalar_lea.sflag [#allocation6], %s223
        %s225 = sand.u32 %s77, 1
        %s226 = smul.addr %s225, 2
        %s227 = scalar_lea.vmem [#allocation5], %s226
        // Predicated region
        $region33: #{tpu_custom_call.1} parent=27 // pred_check
          %p228 = pneg %p90
        $region34: #{tpu_custom_call.1} parent=27 // pred_check_branch
          %230 = sbr.rel (%p228) target = $region36
        $region35: #{tpu_custom_call.1} parent=27 // pred_region
          %231 = dma.done %s224, 32
        $region36: #{tpu_custom_call.1} parent=27 // pred_fallthru
          _
        %s232 = sand.u32 %s49, 1
        %s233 = scalar_lea.sflag [#allocation3], %s232
        %s234 = sand.u32 %s49, 1
        %s235 = smul.addr %s234, 8
        %s236 = scalar_lea.vmem [#allocation2], %s235
        %p237 = pneg %p62
        %p238 = pneg %p59
        %s239 = sand.u32 %s77, 1
        %s240 = scalar_lea.sflag [#allocation6], %s239
        %s241 = sand.u32 %s77, 1
        %s242 = smul.addr %s241, 2
        %s243 = scalar_lea.vmem [#allocation5], %s242
        %p244 = pneg %p90
        %p245 = pneg %p87
        %p246 = pneg %p118
        %p247 = pneg %p115
        %s248 = sand.u32 %s105, 1
        %s249 = scalar_lea.sflag [#allocation4], %s248
        %s250 = sand.u32 %s105, 1
        %s251 = smul.addr %s250, 4
        %s252 = scalar_lea.vmem [#allocation7], %s251
        %p253 = pneg %p146
        %p254 = pneg %p143
        %s255 = sand.u32 %s133, 1
        %s256 = scalar_lea.sflag [#allocation9], %s255
        %s257 = sand.u32 %s133, 1
        %s258 = smul.addr %s257, 8
        %s259 = scalar_lea.vmem [#allocation8], %s258
        %s260 = smul.u32 2, %s32
        %s261 = smul.u32 2, %s32
        %s262 = sadd.s32 %s31, %s32
        %s263 = smul.u32 2, %s262
        %s264 = sadd.s32 %s31, %s32
        %s265 = smul.u32 2, %s264
        %v266 = vld [vmem:[%s218] sm:$0xff]
        %v267 = vld [vmem:[%s227] sm:$0x3]
        %v268 = vlaneseq
        %v269 = vshrl.u32 %v268, 7
        %v270 = vlaneseq
        %v271 = vshrl.u32 %v270, 7
        %v272 = vsub.s32 0, %v271
        %v273 = vrot.slane %v267, %v272
        %v274 = vlaneseq
        %v275 = vshrl.u32 %v274, 7
        %v276 = vsub.s32 1, %v275
        %v277 = vrot.slane %v267, %v276
        %vm278 = vcmp.eq.s32.totalorder %v273, %v269
        %vm279 = vcmp.eq.s32.totalorder %v277, %v269
        %v280 = vsel %vm278, 1, 0
        %v281 = vsel %vm279, 1, 0
        %v282 = vcvt.s32.f32 %v280
        %v283 = vcvt.s32.f32 %v281
        %v284 = vpack.c.bf16 %v282, %v282
        %v285 = vpack.c.bf16 %v283, %v283
        %v288 = vcombine.low %v284, %v285
        %v290 = vunpack.c.l.s4 1983009808
        %v291 = vunpack.c.0.s8 %v290
        %v292 = vlaneseq
        %v293 = vshrl.u32 %v292, 7
        %v294 = vsub.s32 %v291, %v293
        %v295 = vrot.slane %v288, %v294
        %297 = vst [vmem:[%s252] sm:$0xf] %v295
        %v299 = vcombine.high %v266, %v266
        %v301 = vsub.f32 %v282, %v266
        %v302 = vsub.f32 %v283, %v299
        %v303 = vand.u32 2147483647, %v301
        %v304 = vand.u32 2147483647, %v302
        %v307 = vcombine.low %v303, %v304
        %309 = vst [vmem:[%s259] sm:$0xff] %v307
        %s310 = sand.u32 %s105, 1
        %s311 = scalar_lea.sflag [#allocation4], %s310
        %s312 = sand.u32 %s105, 1
        %s313 = smul.addr %s312, 4
        %s314 = scalar_lea.vmem [#allocation7], %s313
        %s315 = sand.u32 %s133, 1
        %s316 = scalar_lea.sflag [#allocation9], %s315
        %s317 = sand.u32 %s133, 1
        %s318 = smul.addr %s317, 8
        %s319 = scalar_lea.vmem [#allocation8], %s318
        // Predicated region
        $region37: #{tpu_custom_call.1} parent=27 // pred_check
          %p320 = pneg %p115
        $region38: #{tpu_custom_call.1} parent=27 // pred_check_branch
          %322 = sbr.rel (%p320) target = $region40
        $region39: #{tpu_custom_call.1} parent=27 // pred_region
          %s323 = sadd.s32 %s31, %s32
          %s324 = smul.u32 2, %s323
          %s326 = ssub.s32 64, 64
          %327 = vsyncadd %s311, %s326
          %s328 = smul.addr %s324, 32
          %s329 = scalar_lea.hbm %s2, %s328
          %s331 = sshll.u32 %s314, 4
          %s332 = int_to_ptr.vmem [resolvable:$true] %s331
          %334 = dma.vmem_to_hbm [thread:$0]  %s332, 64, %s329, %s311
        $region40: #{tpu_custom_call.1} parent=27 // pred_fallthru
          _
        // Predicated region
        $region41: #{tpu_custom_call.1} parent=27 // pred_check
          %p335 = pneg %p143
        $region42: #{tpu_custom_call.1} parent=27 // pred_check_branch
          %337 = sbr.rel (%p335) target = $region44
        $region43: #{tpu_custom_call.1} parent=27 // pred_region
          %s338 = sadd.s32 %s31, %s32
          %s339 = smul.u32 2, %s338
          %s341 = ssub.s32 128, 128
          %342 = vsyncadd %s316, %s341
          %s343 = smul.addr %s339, 64
          %s344 = scalar_lea.hbm %s3, %s343
          %s346 = sshll.u32 %s319, 4
          %s347 = int_to_ptr.vmem [resolvable:$true] %s346
          %349 = dma.vmem_to_hbm [thread:$0]  %s347, 128, %s344, %s316
        $region44: #{tpu_custom_call.1} parent=27 // pred_fallthru
          _
      $region28: #{tpu_custom_call.1} parent=5 // pred_fallthru
        _
      %p350 = scmp.le.s32.totalorder 2, %s22
      // Predicated region
      $region45: #{tpu_custom_call.1} parent=5 // pred_check
        %p351 = pneg %p350
      $region46: #{tpu_custom_call.1} parent=5 // pred_check_branch
        %353 = sbr.rel (%p351) target = $region48
      $region47: #{tpu_custom_call.1} parent=5 // pred_region
        %s354 = ssub.s32 %s22, 2
        // Predicated region
        $region49: #{tpu_custom_call.1} parent=47 // pred_check
          %p355 = pneg %p121
        $region50: #{tpu_custom_call.1} parent=47 // pred_check_branch
          %357 = sbr.rel (%p355) target = $region52
        $region51: #{tpu_custom_call.1} parent=47 // pred_region
          %s358 = sand.u32 %s106, 1
          %s359 = scalar_lea.sflag [#allocation4], %s358
          %s360 = sand.u32 %s106, 1
          %s361 = smul.addr %s360, 4
          %s362 = scalar_lea.vmem [#allocation7], %s361
          %363 = dma.done %s359, 64
        $region52: #{tpu_custom_call.1} parent=47 // pred_fallthru
          _
        // Predicated region
        $region53: #{tpu_custom_call.1} parent=47 // pred_check
          %p364 = pneg %p149
        $region54: #{tpu_custom_call.1} parent=47 // pred_check_branch
          %366 = sbr.rel (%p364) target = $region56
        $region55: #{tpu_custom_call.1} parent=47 // pred_region
          %s367 = sand.u32 %s134, 1
          %s368 = scalar_lea.sflag [#allocation9], %s367
          %s369 = sand.u32 %s134, 1
          %s370 = smul.addr %s369, 8
          %s371 = scalar_lea.vmem [#allocation8], %s370
          %372 = dma.done %s368, 128
        $region56: #{tpu_custom_call.1} parent=47 // pred_fallthru
          _
      $region48: #{tpu_custom_call.1} parent=5 // pred_fallthru
        _
    $region6: #{tpu_custom_call.1} parent=1 // loop_footer
      %s26 = sadd.s32 1, %s22
    $region7: #{tpu_custom_call.1} parent=1 // loop_footer_branch
      %21 = sbr.rel target = $region3
    $region8: #{tpu_custom_call.1} parent=1 // loop_exit
      _
    %373 = vsyncpa [#allocation3], 1
    %s374 = scalar_lea.sflag [#allocation3], 1
    %375 = vsyncpa %s374, 1
    %376 = vsyncpa [#allocation6], 1
    %s377 = scalar_lea.sflag [#allocation6], 1
    %378 = vsyncpa %s377, 1
    %379 = vsyncpa [#allocation4], 1
    %s380 = scalar_lea.sflag [#allocation4], 1
    %381 = vsyncpa %s380, 1
    %382 = vsyncpa [#allocation9], 1
    %s383 = scalar_lea.sflag [#allocation9], 1
    %384 = vsyncpa %s383, 1

</llo_original>
